<compile_context>
chip_gen: v6e
topology: v6e:2x2x1
jax: 0.10.0
libtpu: 0.0.40
codegen_flags: <defaults>
</compile_context>

<pallas_src>
import jax
import jax.numpy as jnp
from jax.experimental import pallas as pl
from jax.experimental.pallas import tpu as pltpu

KS = 3
CIN = 4      # ni
CMID = 8     # nh2 (= nf for expansion=1)
COUT = 8     # nf * expansion
EPS = 1e-5

# --- packed parameter slab layout: (P_ROWS, P_COLS) f32 ------------------------
P_ROWS = CMID + COUT                 # 16 rows on sublanes
WA_OFF = 0                           # (16, 12): rows [0,8)=conv1 taps k0|k1|k2,
                                     #           rows [8,16)=1x1 id weight in centre-tap cols
W2_OFF = WA_OFF + KS * CIN           # (8, 24) in rows [0,8): conv2 taps k0|k1|k2
BN_OFF = W2_OFF + KS * CMID          # 6 cols in rows [0,8): g1, be1, g2, be2, gid, beid
P_COLS = BN_OFF + 6                  # 42


def _resblock_kernel(x_ref, p_ref, o_ref):
    L = x_ref.shape[2]
    x = x_ref[...].astype(jnp.float32)               # (N, CIN, L)
    P = p_ref[...]                                    # (16, P_COLS) f32

    wA = P[:, WA_OFF:WA_OFF + KS * CIN]               # (16, 12): conv1 + folded 1x1 id
    w2 = P[:COUT, W2_OFF:W2_OFF + KS * CMID]          # (8, 24):  conv2
    g1, be1, g2, be2, gid, beid = [
        P[:CMID, BN_OFF + i:BN_OFF + i + 1] for i in range(6)]       # each (8, 1)

    # hoisted boundary machinery: built once, shared by both convs (broadcast on L only)
    lane = jax.lax.broadcasted_iota(jnp.int32, (1, 1, L), 2)
    m_lo = lane >= 1                                  # valid positions for x[l-1]
    m_hi = lane <= L - 2                              # valid positions for x[l+1]

    def bmat(w, v):
        """(Co, K) x (N, K, L) -> (N, Co, L); one batched MXU dot, L on lanes."""
        wb = jnp.broadcast_to(w[None], (v.shape[0],) + w.shape)
        return jax.lax.dot_general(wb, v, (((2,), (1,)), ((0,), (0,))),
                                   preferred_element_type=jnp.float32)

    def taps(v):
        """Stack the three ks=3/pad=1 taps [v[l-1], v[l], v[l+1]] along the
        channel/sublane axis -> (N, 3*C, L).  Lane shifts on the XLU, shared
        boundary masks, single downstream MXU contraction."""
        vm1 = jnp.where(m_lo, pltpu.roll(v, shift=1, axis=2), 0.0)
        vp1 = jnp.where(m_hi, pltpu.roll(v, shift=L - 1, axis=2), 0.0)
        return jnp.concatenate([vm1, v, vp1], axis=1)

    def bn_fold(y, gamma, beta):
        """Training-mode BatchNorm1d (biased var over N,L), single-pass f32
        sum/sumsq statistics, folded to per-channel (scale, shift)."""
        cnt = y.shape[0] * y.shape[2]
        s1 = jnp.sum(jnp.sum(y, axis=2, keepdims=True), axis=0, keepdims=True)
        s2 = jnp.sum(jnp.sum(y * y, axis=2, keepdims=True), axis=0, keepdims=True)
        mean = s1 / cnt
        var = jnp.maximum(s2 / cnt - mean * mean, 0.0)
        sc = gamma * jax.lax.rsqrt(var + EPS)         # (1, C, 1)
        return sc, beta - mean * sc

    # dot #1: conv1 (rows 0..7) and 1x1 id path (rows 8..15) in one contraction over x
    zA = bmat(wA, taps(x))                            # (N, 16, L)
    z1 = zA[:, :CMID, :]                              # conv1 pre-BN
    zid = zA[:, CMID:, :]                             # id-path pre-BN

    sc1, sh1 = bn_fold(z1, g1, be1)
    h1 = jnp.maximum(z1 * sc1 + sh1, 0.0)             # BN1 -> ReLU

    # dot #2: conv2 over the tap-stacked h1
    z2 = bmat(w2, taps(h1))                           # (N, 8, L)

    sc2, sh2 = bn_fold(z2, g2, be2)                   # BN2 (BatchZero slot)
    scid, shid = bn_fold(zid, gid, beid)              # BN on id path
    o_ref[...] = jnp.maximum(z2 * sc2 + zid * scid + (sh2 + shid),
                             0.0).astype(o_ref.dtype)


def resblock_forward(x, params):
    """x: (N, CIN, L) float32 or bfloat16, PyTorch NCL layout (L stays on lanes).
    params use PyTorch layouts: conv weights (Cout, Cin, ks), BN vectors (C,)."""
    N, cin, L = x.shape
    assert cin == CIN and L >= 2

    # ---- pack every weight / BN parameter into one (16, 42) slab (one DMA) ----
    # weight columns ordered k*Ci + ci so tap-block k matches taps() concatenation
    w1_2d = jnp.transpose(params["w1"], (0, 2, 1)).reshape(CMID, KS * CIN)
    w2_2d = jnp.transpose(params["w2"], (0, 2, 1)).reshape(COUT, KS * CMID)
    wid_2d = params["wid"][:, :, 0]                                   # (COUT, CIN)

    wA = jnp.zeros((P_ROWS, KS * CIN), jnp.float32)
    wA = wA.at[:CMID, :].set(w1_2d.astype(jnp.float32))
    wA = wA.at[CMID:, CIN:2 * CIN].set(wid_2d.astype(jnp.float32))   # centre tap only
    w2p = jnp.zeros((P_ROWS, KS * CMID), jnp.float32).at[:COUT, :].set(
        w2_2d.astype(jnp.float32))
    bnp = jnp.zeros((P_ROWS, 6), jnp.float32).at[:CMID, :].set(
        jnp.stack([params[k] for k in ("g1", "be1", "g2", "be2", "gid", "beid")],
                  axis=1).astype(jnp.float32))
    pslab = jnp.concatenate([wA, w2p, bnp], axis=1)                   # (16, P_COLS)

    # ---- single-block VMEM budget (generous upper bound: ~128 f32 rows live) ----
    est_bytes = 4 * N * L * 128
    vmem_limit = None
    if est_bytes > (16 << 20):              # above v5e's default scoped VMEM
        assert est_bytes <= (48 << 20), (
            "activation too large for the single-block kernel; needs the "
            "L-tiled 3-pass BN pipeline (see TODO at top of file)")
        vmem_limit = 48 << 20               # headroom under v7x's 64 MiB physical VMEM

    return pl.pallas_call(
        _resblock_kernel,
        out_shape=jax.ShapeDtypeStruct((N, COUT, L), jnp.float32),
        grid=(1,),
        in_specs=[pl.BlockSpec((N, CIN, L), lambda i: (0, 0, 0)),
                  pl.BlockSpec((P_ROWS, P_COLS), lambda i: (0, 0))],
        out_specs=pl.BlockSpec((N, COUT, L), lambda i: (0, 0, 0)),
        compiler_params=pltpu.CompilerParams(
            dimension_semantics=("arbitrary",),
            vmem_limit_bytes=vmem_limit),
    )(x, pslab)


def ref_forward(x, p):
    """Pure-JAX reference of the same forward math (PyTorch layouts)."""
    L = x.shape[2]

    def conv1d(v, w, pad):
        ks = w.shape[2]
        vp = jnp.pad(v, ((0, 0), (0, 0), (pad, pad)))
        y = jnp.zeros((v.shape[0], w.shape[0], L), jnp.float32)
        for k in range(ks):
            y = y + jnp.einsum("ncl,dc->ndl", vp[:, :, k:k + L], w[:, :, k])
        return y

    def bn(y, g, b):
        m = y.mean(axis=(0, 2), keepdims=True)
        v = ((y - m) ** 2).mean(axis=(0, 2), keepdims=True)
        return (y - m) / jnp.sqrt(v + EPS) * g[None, :, None] + b[None, :, None]

    h1 = jax.nn.relu(bn(conv1d(x, p["w1"], 1), p["g1"], p["be1"]))
    y2 = bn(conv1d(h1, p["w2"], 1), p["g2"], p["be2"])
    yid = bn(conv1d(x, p["wid"], 0), p["gid"], p["beid"])
    return jax.nn.relu(y2 + yid)


if __name__ == "__main__":
    key = jax.random.PRNGKey(0)
    keys = jax.random.split(key, 4)
    N, L = 2, 128

    def nrm(k, shape, scale):
        return scale * jax.random.normal(k, shape, dtype=jnp.float32)

    params = {
        # PyTorch-layout conv weights (Cout, Cin, ks); conv biases are 0.0 at init
        # (init_default) and are dropped by the kernel (cancelled by training BN).
        "w1": nrm(keys[0], (CMID, CIN, KS), 0.5),
        "w2": nrm(keys[1], (COUT, CMID, KS), 0.5),
        "wid": nrm(keys[2], (COUT, CIN, 1), 0.5),
        "g1": jnp.ones((CMID,), jnp.float32),            # BN weight = 1
        "be1": jnp.full((CMID,), 0.001, jnp.float32),    # BN bias = 0.001
        # NOTE: the module's BatchZero init would set this BN weight to 0.0
        # (zeroing the conv-path contribution); a nonzero deterministic value is
        # used here so the kernel's hot path is actually exercised.
        "g2": jnp.full((COUT,), 0.5, jnp.float32),
        "be2": jnp.full((COUT,), 0.001, jnp.float32),
        "gid": jnp.ones((COUT,), jnp.float32),
        "beid": jnp.full((COUT,), 0.001, jnp.float32),
    }

    x = jax.random.normal(keys[3], (N, CIN, L), dtype=jnp.float32)

    out = jax.block_until_ready(resblock_forward(x, params))
    ref = jax.block_until_ready(ref_forward(x, params))

    assert out.shape == (N, COUT, L)
    err = float(jnp.max(jnp.abs(out - ref)))
    assert jnp.allclose(out, ref, atol=2e-4, rtol=2e-4), err
    print("KERNEL_OK")
</pallas_src>

<mosaic_0001>
module attributes {stable_mosaic.version = 11 : i64} {
  func.func @_resblock_kernel(%arg0: i32, %arg1: memref<2x4x128xf32, #tpu.memory_space<vmem>>, %arg2: memref<16x42xf32, #tpu.memory_space<vmem>>, %arg3: memref<2x8x128xf32, #tpu.memory_space<vmem>>) attributes {dimension_semantics = [#tpu.dimension_semantics<arbitrary>], iteration_bounds = array<i64: 1>, scalar_prefetch = 0 : i64, scratch_operands = 0 : i64, tpu.core_type = #tpu.core_type<tc>, window_params = [{pipeline_mode = #tpu.pipeline_mode<synchronous>, transform_indices = @transform_0, window_bounds = array<i64: 2, 4, 128>}, {pipeline_mode = #tpu.pipeline_mode<synchronous>, transform_indices = @transform_1, window_bounds = array<i64: 16, 42>}, {pipeline_mode = #tpu.pipeline_mode<synchronous>, transform_indices = @transform_2, window_bounds = array<i64: 2, 8, 128>}]} {
    %c0 = arith.constant 0 : index
    %c0_0 = arith.constant 0 : index
    %c0_1 = arith.constant 0 : index
    %0 = vector.load %arg1[%c0, %c0_0, %c0_1] : memref<2x4x128xf32, #tpu.memory_space<vmem>>, vector<2x4x128xf32>
    %c0_2 = arith.constant 0 : index
    %c0_3 = arith.constant 0 : index
    %1 = vector.load %arg2[%c0_2, %c0_3] : memref<16x42xf32, #tpu.memory_space<vmem>>, vector<16x42xf32>
    %2 = vector.extract_strided_slice %1 {offsets = [0, 0], sizes = [16, 12], strides = [1, 1]} : vector<16x42xf32> to vector<16x12xf32>
    %3 = vector.extract_strided_slice %1 {offsets = [0, 12], sizes = [8, 24], strides = [1, 1]} : vector<16x42xf32> to vector<8x24xf32>
    %4 = vector.extract_strided_slice %1 {offsets = [0, 36], sizes = [8, 1], strides = [1, 1]} : vector<16x42xf32> to vector<8x1xf32>
    %5 = vector.extract_strided_slice %1 {offsets = [0, 37], sizes = [8, 1], strides = [1, 1]} : vector<16x42xf32> to vector<8x1xf32>
    %6 = vector.extract_strided_slice %1 {offsets = [0, 38], sizes = [8, 1], strides = [1, 1]} : vector<16x42xf32> to vector<8x1xf32>
    %7 = vector.extract_strided_slice %1 {offsets = [0, 39], sizes = [8, 1], strides = [1, 1]} : vector<16x42xf32> to vector<8x1xf32>
    %8 = vector.extract_strided_slice %1 {offsets = [0, 40], sizes = [8, 1], strides = [1, 1]} : vector<16x42xf32> to vector<8x1xf32>
    %9 = vector.extract_strided_slice %1 {offsets = [0, 41], sizes = [8, 1], strides = [1, 1]} : vector<16x42xf32> to vector<8x1xf32>
    %10 = tpu.iota {dimensions = array<i32: 2>} : vector<1x1x128xi32>
    %c1_i32 = arith.constant 1 : i32
    %11 = vector.broadcast %c1_i32 : i32 to vector<1x1x128xi32>
    %12 = arith.cmpi sge, %10, %11 : vector<1x1x128xi32>
    %c126_i32 = arith.constant 126 : i32
    %13 = vector.broadcast %c126_i32 : i32 to vector<1x1x128xi32>
    %14 = arith.cmpi sle, %10, %13 : vector<1x1x128xi32>
    %c1_i32_4 = arith.constant 1 : i32
    %15 = tpu.dynamic_rotate %0 by %c1_i32_4 dim 2 : vector<2x4x128xf32>, i32 -> vector<2x4x128xf32>
    %cst = arith.constant 0.000000e+00 : f32
    %16 = vector.shape_cast %12 : vector<1x1x128xi1> to vector<1x1x128xi1>
    %17 = vector.broadcast %16 : vector<1x1x128xi1> to vector<2x4x128xi1>
    %18 = vector.broadcast %cst : f32 to vector<2x4x128xf32>
    %19 = arith.select %17, %15, %18 : vector<2x4x128xi1>, vector<2x4x128xf32>
    %c127_i32 = arith.constant 127 : i32
    %20 = tpu.dynamic_rotate %0 by %c127_i32 dim 2 : vector<2x4x128xf32>, i32 -> vector<2x4x128xf32>
    %cst_5 = arith.constant 0.000000e+00 : f32
    %21 = vector.shape_cast %14 : vector<1x1x128xi1> to vector<1x1x128xi1>
    %22 = vector.broadcast %21 : vector<1x1x128xi1> to vector<2x4x128xi1>
    %23 = vector.broadcast %cst_5 : f32 to vector<2x4x128xf32>
    %24 = arith.select %22, %20, %23 : vector<2x4x128xi1>, vector<2x4x128xf32>
    %25 = tpu.concatenate %19, %0, %24 in 1 : vector<2x4x128xf32>, vector<2x4x128xf32>, vector<2x4x128xf32> -> vector<2x12x128xf32>
    %26 = vector.shape_cast %2 : vector<16x12xf32> to vector<1x16x12xf32>
    %27 = vector.shape_cast %26 : vector<1x16x12xf32> to vector<1x16x12xf32>
    %28 = vector.broadcast %27 : vector<1x16x12xf32> to vector<2x16x12xf32>
    %cst_6 = arith.constant dense<0.000000e+00> : vector<2x16x128xf32>
    %29 = tpu.matmul %28, %25, %cst_6 {dimension_numbers = #tpu.dot_dimension_numbers<[2], [1], [1], [2], [0, 0, 0, 1, 1, 2], [0], [0]>} : vector<2x16x12xf32>, vector<2x12x128xf32>, vector<2x16x128xf32> -> vector<2x16x128xf32>
    %30 = vector.extract_strided_slice %29 {offsets = [0, 0, 0], sizes = [2, 8, 128], strides = [1, 1, 1]} : vector<2x16x128xf32> to vector<2x8x128xf32>
    %31 = vector.extract_strided_slice %29 {offsets = [0, 8, 0], sizes = [2, 8, 128], strides = [1, 1, 1]} : vector<2x16x128xf32> to vector<2x8x128xf32>
    %cst_7 = arith.constant dense<0.000000e+00> : vector<2x8xf32>
    %32 = vector.multi_reduction <add>, %30, %cst_7 [2] : vector<2x8x128xf32> to vector<2x8xf32>
    %33 = vector.shape_cast %32 : vector<2x8xf32> to vector<2x8x1xf32>
    %cst_8 = arith.constant dense<0.000000e+00> : vector<8x1xf32>
    %34 = vector.multi_reduction <add>, %33, %cst_8 [0] : vector<2x8x1xf32> to vector<8x1xf32>
    %35 = vector.shape_cast %34 : vector<8x1xf32> to vector<1x8x1xf32>
    %36 = arith.mulf %30, %30 : vector<2x8x128xf32>
    %cst_9 = arith.constant dense<0.000000e+00> : vector<2x8xf32>
    %37 = vector.multi_reduction <add>, %36, %cst_9 [2] : vector<2x8x128xf32> to vector<2x8xf32>
    %38 = vector.shape_cast %37 : vector<2x8xf32> to vector<2x8x1xf32>
    %cst_10 = arith.constant dense<0.000000e+00> : vector<8x1xf32>
    %39 = vector.multi_reduction <add>, %38, %cst_10 [0] : vector<2x8x1xf32> to vector<8x1xf32>
    %40 = vector.shape_cast %39 : vector<8x1xf32> to vector<1x8x1xf32>
    %cst_11 = arith.constant 2.560000e+02 : f32
    %41 = vector.broadcast %cst_11 : f32 to vector<1x8x1xf32>
    %42 = arith.divf %35, %41 : vector<1x8x1xf32>
    %cst_12 = arith.constant 2.560000e+02 : f32
    %43 = vector.broadcast %cst_12 : f32 to vector<1x8x1xf32>
    %44 = arith.divf %40, %43 : vector<1x8x1xf32>
    %45 = arith.mulf %42, %42 : vector<1x8x1xf32>
    %46 = arith.subf %44, %45 : vector<1x8x1xf32>
    %cst_13 = arith.constant 0.000000e+00 : f32
    %47 = vector.broadcast %cst_13 : f32 to vector<1x8x1xf32>
    %48 = arith.maximumf %46, %47 : vector<1x8x1xf32>
    %cst_14 = arith.constant 9.99999974E-6 : f32
    %49 = vector.broadcast %cst_14 : f32 to vector<1x8x1xf32>
    %50 = arith.addf %48, %49 : vector<1x8x1xf32>
    %51 = math.rsqrt %50 : vector<1x8x1xf32>
    %52 = vector.shape_cast %4 : vector<8x1xf32> to vector<1x8x1xf32>
    %53 = arith.mulf %52, %51 : vector<1x8x1xf32>
    %54 = arith.mulf %42, %53 : vector<1x8x1xf32>
    %55 = vector.shape_cast %5 : vector<8x1xf32> to vector<1x8x1xf32>
    %56 = arith.subf %55, %54 : vector<1x8x1xf32>
    %57 = vector.broadcast %53 : vector<1x8x1xf32> to vector<2x8x128xf32>
    %58 = arith.mulf %30, %57 : vector<2x8x128xf32>
    %59 = vector.broadcast %56 : vector<1x8x1xf32> to vector<2x8x128xf32>
    %60 = arith.addf %58, %59 : vector<2x8x128xf32>
    %cst_15 = arith.constant 0.000000e+00 : f32
    %61 = vector.broadcast %cst_15 : f32 to vector<2x8x128xf32>
    %62 = arith.maximumf %60, %61 : vector<2x8x128xf32>
    %c1_i32_16 = arith.constant 1 : i32
    %63 = tpu.dynamic_rotate %62 by %c1_i32_16 dim 2 : vector<2x8x128xf32>, i32 -> vector<2x8x128xf32>
    %cst_17 = arith.constant 0.000000e+00 : f32
    %64 = vector.shape_cast %12 : vector<1x1x128xi1> to vector<1x1x128xi1>
    %65 = vector.broadcast %64 : vector<1x1x128xi1> to vector<2x8x128xi1>
    %66 = vector.broadcast %cst_17 : f32 to vector<2x8x128xf32>
    %67 = arith.select %65, %63, %66 : vector<2x8x128xi1>, vector<2x8x128xf32>
    %c127_i32_18 = arith.constant 127 : i32
    %68 = tpu.dynamic_rotate %62 by %c127_i32_18 dim 2 : vector<2x8x128xf32>, i32 -> vector<2x8x128xf32>
    %cst_19 = arith.constant 0.000000e+00 : f32
    %69 = vector.shape_cast %14 : vector<1x1x128xi1> to vector<1x1x128xi1>
    %70 = vector.broadcast %69 : vector<1x1x128xi1> to vector<2x8x128xi1>
    %71 = vector.broadcast %cst_19 : f32 to vector<2x8x128xf32>
    %72 = arith.select %70, %68, %71 : vector<2x8x128xi1>, vector<2x8x128xf32>
    %73 = tpu.concatenate %67, %62, %72 in 1 : vector<2x8x128xf32>, vector<2x8x128xf32>, vector<2x8x128xf32> -> vector<2x24x128xf32>
    %74 = vector.shape_cast %3 : vector<8x24xf32> to vector<1x8x24xf32>
    %75 = vector.shape_cast %74 : vector<1x8x24xf32> to vector<1x8x24xf32>
    %76 = vector.broadcast %75 : vector<1x8x24xf32> to vector<2x8x24xf32>
    %cst_20 = arith.constant dense<0.000000e+00> : vector<2x8x128xf32>
    %77 = tpu.matmul %76, %73, %cst_20 {dimension_numbers = #tpu.dot_dimension_numbers<[2], [1], [1], [2], [0, 0, 0, 1, 1, 2], [0], [0]>} : vector<2x8x24xf32>, vector<2x24x128xf32>, vector<2x8x128xf32> -> vector<2x8x128xf32>
    %cst_21 = arith.constant dense<0.000000e+00> : vector<2x8xf32>
    %78 = vector.multi_reduction <add>, %77, %cst_21 [2] : vector<2x8x128xf32> to vector<2x8xf32>
    %79 = vector.shape_cast %78 : vector<2x8xf32> to vector<2x8x1xf32>
    %cst_22 = arith.constant dense<0.000000e+00> : vector<8x1xf32>
    %80 = vector.multi_reduction <add>, %79, %cst_22 [0] : vector<2x8x1xf32> to vector<8x1xf32>
    %81 = vector.shape_cast %80 : vector<8x1xf32> to vector<1x8x1xf32>
    %82 = arith.mulf %77, %77 : vector<2x8x128xf32>
    %cst_23 = arith.constant dense<0.000000e+00> : vector<2x8xf32>
    %83 = vector.multi_reduction <add>, %82, %cst_23 [2] : vector<2x8x128xf32> to vector<2x8xf32>
    %84 = vector.shape_cast %83 : vector<2x8xf32> to vector<2x8x1xf32>
    %cst_24 = arith.constant dense<0.000000e+00> : vector<8x1xf32>
    %85 = vector.multi_reduction <add>, %84, %cst_24 [0] : vector<2x8x1xf32> to vector<8x1xf32>
    %86 = vector.shape_cast %85 : vector<8x1xf32> to vector<1x8x1xf32>
    %cst_25 = arith.constant 2.560000e+02 : f32
    %87 = vector.broadcast %cst_25 : f32 to vector<1x8x1xf32>
    %88 = arith.divf %81, %87 : vector<1x8x1xf32>
    %cst_26 = arith.constant 2.560000e+02 : f32
    %89 = vector.broadcast %cst_26 : f32 to vector<1x8x1xf32>
    %90 = arith.divf %86, %89 : vector<1x8x1xf32>
    %91 = arith.mulf %88, %88 : vector<1x8x1xf32>
    %92 = arith.subf %90, %91 : vector<1x8x1xf32>
    %cst_27 = arith.constant 0.000000e+00 : f32
    %93 = vector.broadcast %cst_27 : f32 to vector<1x8x1xf32>
    %94 = arith.maximumf %92, %93 : vector<1x8x1xf32>
    %cst_28 = arith.constant 9.99999974E-6 : f32
    %95 = vector.broadcast %cst_28 : f32 to vector<1x8x1xf32>
    %96 = arith.addf %94, %95 : vector<1x8x1xf32>
    %97 = math.rsqrt %96 : vector<1x8x1xf32>
    %98 = vector.shape_cast %6 : vector<8x1xf32> to vector<1x8x1xf32>
    %99 = arith.mulf %98, %97 : vector<1x8x1xf32>
    %100 = arith.mulf %88, %99 : vector<1x8x1xf32>
    %101 = vector.shape_cast %7 : vector<8x1xf32> to vector<1x8x1xf32>
    %102 = arith.subf %101, %100 : vector<1x8x1xf32>
    %cst_29 = arith.constant dense<0.000000e+00> : vector<2x8xf32>
    %103 = vector.multi_reduction <add>, %31, %cst_29 [2] : vector<2x8x128xf32> to vector<2x8xf32>
    %104 = vector.shape_cast %103 : vector<2x8xf32> to vector<2x8x1xf32>
    %cst_30 = arith.constant dense<0.000000e+00> : vector<8x1xf32>
    %105 = vector.multi_reduction <add>, %104, %cst_30 [0] : vector<2x8x1xf32> to vector<8x1xf32>
    %106 = vector.shape_cast %105 : vector<8x1xf32> to vector<1x8x1xf32>
    %107 = arith.mulf %31, %31 : vector<2x8x128xf32>
    %cst_31 = arith.constant dense<0.000000e+00> : vector<2x8xf32>
    %108 = vector.multi_reduction <add>, %107, %cst_31 [2] : vector<2x8x128xf32> to vector<2x8xf32>
    %109 = vector.shape_cast %108 : vector<2x8xf32> to vector<2x8x1xf32>
    %cst_32 = arith.constant dense<0.000000e+00> : vector<8x1xf32>
    %110 = vector.multi_reduction <add>, %109, %cst_32 [0] : vector<2x8x1xf32> to vector<8x1xf32>
    %111 = vector.shape_cast %110 : vector<8x1xf32> to vector<1x8x1xf32>
    %cst_33 = arith.constant 2.560000e+02 : f32
    %112 = vector.broadcast %cst_33 : f32 to vector<1x8x1xf32>
    %113 = arith.divf %106, %112 : vector<1x8x1xf32>
    %cst_34 = arith.constant 2.560000e+02 : f32
    %114 = vector.broadcast %cst_34 : f32 to vector<1x8x1xf32>
    %115 = arith.divf %111, %114 : vector<1x8x1xf32>
    %116 = arith.mulf %113, %113 : vector<1x8x1xf32>
    %117 = arith.subf %115, %116 : vector<1x8x1xf32>
    %cst_35 = arith.constant 0.000000e+00 : f32
    %118 = vector.broadcast %cst_35 : f32 to vector<1x8x1xf32>
    %119 = arith.maximumf %117, %118 : vector<1x8x1xf32>
    %cst_36 = arith.constant 9.99999974E-6 : f32
    %120 = vector.broadcast %cst_36 : f32 to vector<1x8x1xf32>
    %121 = arith.addf %119, %120 : vector<1x8x1xf32>
    %122 = math.rsqrt %121 : vector<1x8x1xf32>
    %123 = vector.shape_cast %8 : vector<8x1xf32> to vector<1x8x1xf32>
    %124 = arith.mulf %123, %122 : vector<1x8x1xf32>
    %125 = arith.mulf %113, %124 : vector<1x8x1xf32>
    %126 = vector.shape_cast %9 : vector<8x1xf32> to vector<1x8x1xf32>
    %127 = arith.subf %126, %125 : vector<1x8x1xf32>
    %128 = vector.broadcast %99 : vector<1x8x1xf32> to vector<2x8x128xf32>
    %129 = arith.mulf %77, %128 : vector<2x8x128xf32>
    %130 = vector.broadcast %124 : vector<1x8x1xf32> to vector<2x8x128xf32>
    %131 = arith.mulf %31, %130 : vector<2x8x128xf32>
    %132 = arith.addf %129, %131 : vector<2x8x128xf32>
    %133 = arith.addf %102, %127 : vector<1x8x1xf32>
    %134 = vector.broadcast %133 : vector<1x8x1xf32> to vector<2x8x128xf32>
    %135 = arith.addf %132, %134 : vector<2x8x128xf32>
    %cst_37 = arith.constant 0.000000e+00 : f32
    %136 = vector.broadcast %cst_37 : f32 to vector<2x8x128xf32>
    %137 = arith.maximumf %135, %136 : vector<2x8x128xf32>
    %c0_38 = arith.constant 0 : index
    %c0_39 = arith.constant 0 : index
    %c0_40 = arith.constant 0 : index
    %138 = vector.load %arg3[%c0_38, %c0_39, %c0_40] : memref<2x8x128xf32, #tpu.memory_space<vmem>>, vector<2x8x128xf32>
    tpu.vector_store %arg3[%c0_38, %c0_39, %c0_40], %137 {strides = array<i32>} : memref<2x8x128xf32, #tpu.memory_space<vmem>>, vector<2x8x128xf32>,
    return
  }
  func.func @transform_0(%arg0: i32) -> (i32, i32, i32) {
    %c0_i32 = arith.constant 0 : i32
    %c0_i32_0 = arith.constant 0 : i32
    %c0_i32_1 = arith.constant 0 : i32
    %c0_i32_2 = arith.constant 0 : i32
    return %c0_i32, %c0_i32_0, %c0_i32_1 : i32, i32, i32
  }
  func.func @transform_1(%arg0: i32) -> (i32, i32) {
    %c0_i32 = arith.constant 0 : i32
    %c0_i32_0 = arith.constant 0 : i32
    %c0_i32_1 = arith.constant 0 : i32
    return %c0_i32, %c0_i32_0 : i32, i32
  }
  func.func @transform_2(%arg0: i32) -> (i32, i32, i32) {
    %c0_i32 = arith.constant 0 : i32
    %c0_i32_0 = arith.constant 0 : i32
    %c0_i32_1 = arith.constant 0 : i32
    %c0_i32_2 = arith.constant 0 : i32
    return %c0_i32, %c0_i32_0, %c0_i32_1 : i32, i32, i32
  }
}

</mosaic_0001>

<llo_original>
// kernel: tpu_custom_call.1
$region0: #{tpu_custom_call.1}
  #allocation0 [shape = 'u32[]', space=smem, size = 0x4, offset = 0x4, fixed_abs, tag = 'smem constant byte address 0x4 - core index']
  #allocation1 [shape = 'u32[144,128]{1,0:T(1,128)}', space=vmem, size = 0x12000, scoped, tag = 'internal scratch']
  %s0 = inlined_call_operand.hbm [shape: f32[2,4,128], index: 0, kind: input, shape index: {}]
  %s1 = inlined_call_operand.hbm [shape: f32[16,42], index: 1, kind: input, shape index: {}]
  %s2 = inlined_call_operand.hbm [shape: f32[2,8,128], index: 2, kind: output, shape index: {}]
  %s3 = sld [smem:[#allocation0]]
  $region26: #{tpu_custom_call.1} parent=0
    _
  %s5 = ssub.s32 1, %s3
  %s6 = scalar_select 0, %s5, %s3
  $region1: #{tpu_custom_call.1} parent=0
    #allocation2 [shape = 'u8[4096]{0}', space=vmem, size = 0x1000, scoped, tag = 'input window, operand 0, single buffered']
    #allocation3 [shape = 's32[1]{0}', space=sflag, size = 0x4, scoped, tag = 'scoped memory for tpu_custom_call.1']
    #allocation4 [shape = 's32[1]{0}', space=sflag, size = 0x4, scoped, tag = 'scoped memory for tpu_custom_call.1']
    #allocation5 [shape = 'u8[8192]{0}', space=vmem, size = 0x2000, scoped, tag = 'input window, operand 1, single buffered']
    #allocation6 [shape = 's32[1]{0}', space=sflag, size = 0x4, scoped, tag = 'scoped memory for tpu_custom_call.1']
    #allocation7 [shape = 'u8[8192]{0}', space=vmem, size = 0x2000, scoped, tag = 'output window, operand 0, single buffered']
    %7 = vsyncpa [#allocation3], 0
    %8 = vsyncpa [#allocation6], 0
    %9 = vsyncpa [#allocation4], 0
    // Predicated region
    $region2: #{tpu_custom_call.1} parent=1 // pred_check
      _
    $region3: #{tpu_custom_call.1} parent=1 // pred_check_branch
      %11 = sbr.rel (0) target = $region5
    $region4: #{tpu_custom_call.1} parent=1 // pred_region
      %s13 = ssub.s32 128, 128
      %14 = vsyncadd [#allocation3], %s13
      %s15 = sshll.u32 [#allocation2], 4
      %s16 = int_to_ptr.vmem [resolvable:$true] %s15
      %21 = dma.hbm_to_vmem [thread:$0]  %s0, 128, %s16, [#allocation3], 64, 64, 4
    $region5: #{tpu_custom_call.1} parent=1 // pred_fallthru
      _
    // Predicated region
    $region6: #{tpu_custom_call.1} parent=1 // pred_check
      _
    $region7: #{tpu_custom_call.1} parent=1 // pred_check_branch
      %23 = sbr.rel (0) target = $region9
    $region8: #{tpu_custom_call.1} parent=1 // pred_region
      %s25 = ssub.s32 256, 256
      %26 = vsyncadd [#allocation6], %s25
      %s27 = sshll.u32 [#allocation5], 4
      %s28 = int_to_ptr.vmem [resolvable:$true] %s27
      %33 = dma.hbm_to_vmem [thread:$0]  %s1, 256, %s28, [#allocation6], 128, 128, 8
    $region9: #{tpu_custom_call.1} parent=1 // pred_fallthru
      _
    // Predicated region
    $region10: #{tpu_custom_call.1} parent=1 // pred_check
      _
    $region11: #{tpu_custom_call.1} parent=1 // pred_check_branch
      %35 = sbr.rel (0) target = $region13
    $region12: #{tpu_custom_call.1} parent=1 // pred_region
      %36 = dma.done [#allocation3], 128
    $region13: #{tpu_custom_call.1} parent=1 // pred_fallthru
      _
    // Predicated region
    $region14: #{tpu_custom_call.1} parent=1 // pred_check
      _
    $region15: #{tpu_custom_call.1} parent=1 // pred_check_branch
      %38 = sbr.rel (0) target = $region17
    $region16: #{tpu_custom_call.1} parent=1 // pred_region
      %39 = dma.done [#allocation6], 256
    $region17: #{tpu_custom_call.1} parent=1 // pred_fallthru
      _
    %v40 = vld [vmem:[#allocation2] sm:$0xf]
    %v41 = vld [vmem:[#allocation2 + $0x4] sm:$0xf]
    %v42 = vld [vmem:[#allocation5] sm:$0xff]
    %v43 = vld [vmem:[#allocation5 + $0x8] sm:$0xff]
    %v44 = vlaneseq
    %v45 = vand.u32 %v44, 127
    %vm46 = vcmp.ge.s32.totalorder %v45, 1
    %vm47 = vcmp.le.s32.totalorder %v45, 126
    %48 = vrot.lane.b32.xlu0 %v40, 1
    %v49 = vpop.permute.xlu0 %48
    %50 = vrot.lane.b32.xlu0 %v41, 1
    %v51 = vpop.permute.xlu0 %50
    %v52 = vsel %vm46, 1, 0
    %vm53 = vcmp.eq.s32.totalorder %v52, 1
    %v54 = vsel %vm53, %v49, 0.0
    %v55 = vsel %vm53, %v51, 0.0
    %56 = vrot.lane.b32.xlu0 %v40, 127
    %v57 = vpop.permute.xlu0 %56
    %58 = vrot.lane.b32.xlu0 %v41, 127
    %v59 = vpop.permute.xlu0 %58
    %v60 = vsel %vm47, 1, 0
    %vm61 = vcmp.eq.s32.totalorder %v60, 1
    %v62 = vsel %vm61, %v57, 0.0
    %v63 = vsel %vm61, %v59, 0.0
    %v66 = vrot.slane %v40, 4
    %v67 = vrot.slane %v41, 4
    %vm70 = vcmask 1043456
    %v71 = vsel %vm70, %v54, %v66
    %v72 = vsel %vm70, %v55, %v67
    %vm73 = vcmask 97280
    %v75 = vsel %vm73, %v42, 0
    %v78 = vsel %vm73, %v43, 0
    %v81 = vsel %vm70, %v62, 0
    %83 = vmatprep.subr.mxu0 0.0
    %84 = vmatpush1.msra.mxu0 0.0
    %85 = vmatprep.subr.mxu0 0.0
    %86 = vmatpush1.msra.mxu0 0.0
    %87 = vmatprep.subr.mxu0 0.0
    %88 = vmatpush1.msra.mxu0 0.0
    %89 = vmatprep.subr.mxu0 0.0
    %90 = vmatpush1.msra.mxu0 0.0
    %91 = vmatprep.subr.mxu0 0.0
    %92 = vmatpush1.msra.mxu0 0.0
    %93 = vmatprep.subr.mxu0 0.0
    %94 = vmatpush1.msra.mxu0 0.0
    %95 = vmatprep.subr.mxu0 0.0
    %96 = vmatpush1.msra.mxu0 0.0
    %97 = vmatprep.subr.mxu0 0.0
    %98 = vmatpush1.msra.mxu0 0.0
    %99 = vmatprep.subr.mxu0 0.0
    %100 = vmatpush1.msra.mxu0 0.0
    %101 = vmatprep.subr.mxu0 0.0
    %102 = vmatpush1.msra.mxu0 0.0
    %103 = vmatprep.subr.mxu0 0.0
    %104 = vmatpush1.msra.mxu0 0.0
    %105 = vmatprep.subr.mxu0 0.0
    %106 = vmatpush1.msra.mxu0 0.0
    %107 = vmatprep.subr.mxu0 0.0
    %108 = vmatpush1.msra.mxu0 0.0
    %109 = vmatprep.subr.mxu0 0.0
    %110 = vmatpush1.msra.mxu0 0.0
    %111 = vmatprep.subr.mxu0 0.0
    %112 = vmatpush1.msra.mxu0 %v81
    %113 = vmatprep.subr.mxu0 0.0
    %114 = vmatpush1.msra.mxu0 %v71
    %115 = vmatprep.subr.mxu0 0.0
    %116 = vmatpush2.msra.mxu0 0.0
    %117 = vmatprep.subr.mxu0 0.0
    %118 = vmatpush2.msra.mxu0 0.0
    %119 = vmatprep.subr.mxu0 0.0
    %120 = vmatpush2.msra.mxu0 0.0
    %121 = vmatprep.subr.mxu0 0.0
    %122 = vmatpush2.msra.mxu0 0.0
    %123 = vmatprep.subr.mxu0 0.0
    %124 = vmatpush2.msra.mxu0 0.0
    %125 = vmatprep.subr.mxu0 0.0
    %126 = vmatpush2.msra.mxu0 0.0
    %127 = vmatprep.subr.mxu0 0.0
    %128 = vmatpush2.msra.mxu0 0.0
    %129 = vmatprep.subr.mxu0 0.0
    %130 = vmatpush2.msra.mxu0 0.0
    %131 = vmatprep.subr.mxu0 0.0
    %132 = vmatpush2.msra.mxu0 0.0
    %133 = vmatprep.subr.mxu0 0.0
    %134 = vmatpush2.msra.mxu0 0.0
    %135 = vmatprep.subr.mxu0 0.0
    %136 = vmatpush2.msra.mxu0 0.0
    %137 = vmatprep.subr.mxu0 0.0
    %138 = vmatpush2.msra.mxu0 0.0
    %139 = vmatprep.subr.mxu0 0.0
    %140 = vmatpush2.msra.mxu0 0.0
    %141 = vmatprep.subr.mxu0 0.0
    %142 = vmatpush2.msra.mxu0 0.0
    %143 = vmatprep.subr.mxu0 0.0
    %144 = vmatpush2.msra.mxu0 0.0
    %145 = vmatprep.subr.mxu0 0.0
    %146 = vmatpush2.msra.mxu0 0.0
    %147 = vmatprep.mubr.f32.mxu0 0.0
    %148 = vmatmul.mubr.f32.gmra.mxu0 %v75
    %v149 = vpop.f32.mrf.mxu0
    %v150 = vadd.f32 0.0, %v149
    %v151 = vpop.f32.mrf.mxu0
    %152 = vmatprep.mubr.f32.mxu0 0.0
    %153 = vmatmul.mubr.f32.gmra.mxu0 %v78
    %v154 = vpop.f32.mrf.mxu0
    %v155 = vadd.f32 0.0, %v154
    %v156 = vpop.f32.mrf.mxu0
    %157 = vdwg.mxu0
    %v159 = vsel %vm70, %v63, 0
    %161 = vmatprep.subr.mxu0 0.0
    %162 = vmatpush1.msra.mxu0 0.0
    %163 = vmatprep.subr.mxu0 0.0
    %164 = vmatpush1.msra.mxu0 0.0
    %165 = vmatprep.subr.mxu0 0.0
    %166 = vmatpush1.msra.mxu0 0.0
    %167 = vmatprep.subr.mxu0 0.0
    %168 = vmatpush1.msra.mxu0 0.0
    %169 = vmatprep.subr.mxu0 0.0
    %170 = vmatpush1.msra.mxu0 0.0
    %171 = vmatprep.subr.mxu0 0.0
    %172 = vmatpush1.msra.mxu0 0.0
    %173 = vmatprep.subr.mxu0 0.0
    %174 = vmatpush1.msra.mxu0 0.0
    %175 = vmatprep.subr.mxu0 0.0
    %176 = vmatpush1.msra.mxu0 0.0
    %177 = vmatprep.subr.mxu0 0.0
    %178 = vmatpush1.msra.mxu0 0.0
    %179 = vmatprep.subr.mxu0 0.0
    %180 = vmatpush1.msra.mxu0 0.0
    %181 = vmatprep.subr.mxu0 0.0
    %182 = vmatpush1.msra.mxu0 0.0
    %183 = vmatprep.subr.mxu0 0.0
    %184 = vmatpush1.msra.mxu0 0.0
    %185 = vmatprep.subr.mxu0 0.0
    %186 = vmatpush1.msra.mxu0 0.0
    %187 = vmatprep.subr.mxu0 0.0
    %188 = vmatpush1.msra.mxu0 0.0
    %189 = vmatprep.subr.mxu0 0.0
    %190 = vmatpush1.msra.mxu0 %v159
    %191 = vmatprep.subr.mxu0 0.0
    %192 = vmatpush1.msra.mxu0 %v72
    %193 = vmatprep.subr.mxu0 0.0
    %194 = vmatpush2.msra.mxu0 0.0
    %195 = vmatprep.subr.mxu0 0.0
    %196 = vmatpush2.msra.mxu0 0.0
    %197 = vmatprep.subr.mxu0 0.0
    %198 = vmatpush2.msra.mxu0 0.0
    %199 = vmatprep.subr.mxu0 0.0
    %200 = vmatpush2.msra.mxu0 0.0
    %201 = vmatprep.subr.mxu0 0.0
    %202 = vmatpush2.msra.mxu0 0.0
    %203 = vmatprep.subr.mxu0 0.0
    %204 = vmatpush2.msra.mxu0 0.0
    %205 = vmatprep.subr.mxu0 0.0
    %206 = vmatpush2.msra.mxu0 0.0
    %207 = vmatprep.subr.mxu0 0.0
    %208 = vmatpush2.msra.mxu0 0.0
    %209 = vmatprep.subr.mxu0 0.0
    %210 = vmatpush2.msra.mxu0 0.0
    %211 = vmatprep.subr.mxu0 0.0
    %212 = vmatpush2.msra.mxu0 0.0
    %213 = vmatprep.subr.mxu0 0.0
    %214 = vmatpush2.msra.mxu0 0.0
    %215 = vmatprep.subr.mxu0 0.0
    %216 = vmatpush2.msra.mxu0 0.0
    %217 = vmatprep.subr.mxu0 0.0
    %218 = vmatpush2.msra.mxu0 0.0
    %219 = vmatprep.subr.mxu0 0.0
    %220 = vmatpush2.msra.mxu0 0.0
    %221 = vmatprep.subr.mxu0 0.0
    %222 = vmatpush2.msra.mxu0 0.0
    %223 = vmatprep.subr.mxu0 0.0
    %224 = vmatpush2.msra.mxu0 0.0
    %225 = vmatprep.mubr.f32.mxu0 0.0
    %226 = vmatmul.mubr.f32.gmra.mxu0 %v75
    %v227 = vpop.f32.mrf.mxu0
    %v228 = vadd.f32 0.0, %v227
    %v229 = vpop.f32.mrf.mxu0
    %230 = vmatprep.mubr.f32.mxu0 0.0
    %231 = vmatmul.mubr.f32.gmra.mxu0 %v78
    %v232 = vpop.f32.mrf.mxu0
    %v233 = vadd.f32 0.0, %v232
    %v234 = vpop.f32.mrf.mxu0
    %235 = vdwg.mxu0
    %236 = vadd.xlane.f32.xlu0 %v150
    %v237 = vpop.xlane.xlu0 %236
    %238 = vadd.xlane.f32.xlu0 %v228
    %v239 = vpop.xlane.xlu0 %238
    %v240 = vadd.f32 %v237, %v239
    %v241 = vmul.f32 %v150, %v150
    %v242 = vmul.f32 %v228, %v228
    %243 = vadd.xlane.f32.xlu0 %v241
    %v244 = vpop.xlane.xlu0 %243
    %245 = vadd.xlane.f32.xlu0 %v242
    %v246 = vpop.xlane.xlu0 %245
    %v247 = vadd.f32 %v244, %v246
    %v248 = vrcp.pop 256.0
    %v249 = vmul.f32 %v240, %v248
    %v250 = vmul.f32 %v247, %v248
    %v251 = vmul.f32 %v249, %v249
    %v252 = vsub.f32 %v250, %v251
    %v253 = vmax.f32 %v252, 0.0
    %v254 = vadd.f32 %v253, 1e-05
    %v255 = vrsqrt.pop %v254
    %v256 = vmul.f32 %v42, %v255
    %v257 = vmul.f32 %v249, %v256
    %259 = vrot.lane.b32.xlu0 %v257, 1
    %v260 = vpop.permute.xlu0 %259
    %v262 = vsub.f32 %v42, %v260
    %264 = vset.pattern.permute.xlu0 36
    %265 = vperm.xlu0 %264, %v256
    %v266 = vpop.permute.xlu0 %265
    %v268 = vmul.f32 %v150, %v266
    %v269 = vmul.f32 %v228, %v266
    %271 = vset.pattern.permute.xlu0 37
    %272 = vperm.xlu0 %271, %v262
    %v273 = vpop.permute.xlu0 %272
    %v275 = vadd.f32 %v268, %v273
    %v276 = vadd.f32 %v269, %v273
    %v277 = vmax.f32 %v275, 0.0
    %v278 = vmax.f32 %v276, 0.0
    %279 = vrot.lane.b32.xlu0 %v277, 1
    %v280 = vpop.permute.xlu0 %279
    %281 = vrot.lane.b32.xlu0 %v278, 1
    %v282 = vpop.permute.xlu0 %281
    %v283 = vsel %vm53, %v280, 0.0
    %v284 = vsel %vm53, %v282, 0.0
    %285 = vrot.lane.b32.xlu0 %v277, 127
    %v286 = vpop.permute.xlu0 %285
    %287 = vrot.lane.b32.xlu0 %v278, 127
    %v288 = vpop.permute.xlu0 %287
    %v289 = vsel %vm61, %v286, 0.0
    %v290 = vsel %vm61, %v288, 0.0
    %291 = vrot.lane.b32.xlu0 %v42, 116
    %v292 = vpop.permute.xlu0 %291
    %vm293 = vcmask 195584
    %v294 = vsel %vm293, %v292, 0
    %296 = vmatprep.subr.mxu0 0.0
    %297 = vmatpush1.msra.mxu0 0.0
    %298 = vmatprep.subr.mxu0 0.0
    %299 = vmatpush1.msra.mxu0 0.0
    %300 = vmatprep.subr.mxu0 0.0
    %301 = vmatpush1.msra.mxu0 0.0
    %302 = vmatprep.subr.mxu0 0.0
    %303 = vmatpush1.msra.mxu0 0.0
    %304 = vmatprep.subr.mxu0 0.0
    %305 = vmatpush1.msra.mxu0 0.0
    %306 = vmatprep.subr.mxu0 0.0
    %307 = vmatpush1.msra.mxu0 0.0
    %308 = vmatprep.subr.mxu0 0.0
    %309 = vmatpush1.msra.mxu0 0.0
    %310 = vmatprep.subr.mxu0 0.0
    %311 = vmatpush1.msra.mxu0 0.0
    %312 = vmatprep.subr.mxu0 0.0
    %313 = vmatpush1.msra.mxu0 0.0
    %314 = vmatprep.subr.mxu0 0.0
    %315 = vmatpush1.msra.mxu0 0.0
    %316 = vmatprep.subr.mxu0 0.0
    %317 = vmatpush1.msra.mxu0 0.0
    %318 = vmatprep.subr.mxu0 0.0
    %319 = vmatpush1.msra.mxu0 0.0
    %320 = vmatprep.subr.mxu0 0.0
    %321 = vmatpush1.msra.mxu0 0.0
    %322 = vmatprep.subr.mxu0 0.0
    %323 = vmatpush1.msra.mxu0 %v289
    %324 = vmatprep.subr.mxu0 0.0
    %325 = vmatpush1.msra.mxu0 %v277
    %326 = vmatprep.subr.mxu0 0.0
    %327 = vmatpush1.msra.mxu0 %v283
    %328 = vmatprep.subr.mxu0 0.0
    %329 = vmatpush2.msra.mxu0 0.0
    %330 = vmatprep.subr.mxu0 0.0
    %331 = vmatpush2.msra.mxu0 0.0
    %332 = vmatprep.subr.mxu0 0.0
    %333 = vmatpush2.msra.mxu0 0.0
    %334 = vmatprep.subr.mxu0 0.0
    %335 = vmatpush2.msra.mxu0 0.0
    %336 = vmatprep.subr.mxu0 0.0
    %337 = vmatpush2.msra.mxu0 0.0
    %338 = vmatprep.subr.mxu0 0.0
    %339 = vmatpush2.msra.mxu0 0.0
    %340 = vmatprep.subr.mxu0 0.0
    %341 = vmatpush2.msra.mxu0 0.0
    %342 = vmatprep.subr.mxu0 0.0
    %343 = vmatpush2.msra.mxu0 0.0
    %344 = vmatprep.subr.mxu0 0.0
    %345 = vmatpush2.msra.mxu0 0.0
    %346 = vmatprep.subr.mxu0 0.0
    %347 = vmatpush2.msra.mxu0 0.0
    %348 = vmatprep.subr.mxu0 0.0
    %349 = vmatpush2.msra.mxu0 0.0
    %350 = vmatprep.subr.mxu0 0.0
    %351 = vmatpush2.msra.mxu0 0.0
    %352 = vmatprep.subr.mxu0 0.0
    %353 = vmatpush2.msra.mxu0 0.0
    %354 = vmatprep.subr.mxu0 0.0
    %355 = vmatpush2.msra.mxu0 0.0
    %356 = vmatprep.subr.mxu0 0.0
    %357 = vmatpush2.msra.mxu0 0.0
    %358 = vmatprep.subr.mxu0 0.0
    %359 = vmatpush2.msra.mxu0 0.0
    %360 = vmatprep.mubr.f32.mxu0 0.0
    %361 = vmatmul.mubr.f32.gmra.mxu0 %v294
    %v362 = vpop.f32.mrf.mxu0
    %v363 = vadd.f32 0.0, %v362
    %v364 = vpop.f32.mrf.mxu0
    %365 = vdwg.mxu0
    %366 = vmatprep.subr.mxu0 0.0
    %367 = vmatpush1.msra.mxu0 0.0
    %368 = vmatprep.subr.mxu0 0.0
    %369 = vmatpush1.msra.mxu0 0.0
    %370 = vmatprep.subr.mxu0 0.0
    %371 = vmatpush1.msra.mxu0 0.0
    %372 = vmatprep.subr.mxu0 0.0
    %373 = vmatpush1.msra.mxu0 0.0
    %374 = vmatprep.subr.mxu0 0.0
    %375 = vmatpush1.msra.mxu0 0.0
    %376 = vmatprep.subr.mxu0 0.0
    %377 = vmatpush1.msra.mxu0 0.0
    %378 = vmatprep.subr.mxu0 0.0
    %379 = vmatpush1.msra.mxu0 0.0
    %380 = vmatprep.subr.mxu0 0.0
    %381 = vmatpush1.msra.mxu0 0.0
    %382 = vmatprep.subr.mxu0 0.0
    %383 = vmatpush1.msra.mxu0 0.0
    %384 = vmatprep.subr.mxu0 0.0
    %385 = vmatpush1.msra.mxu0 0.0
    %386 = vmatprep.subr.mxu0 0.0
    %387 = vmatpush1.msra.mxu0 0.0
    %388 = vmatprep.subr.mxu0 0.0
    %389 = vmatpush1.msra.mxu0 0.0
    %390 = vmatprep.subr.mxu0 0.0
    %391 = vmatpush1.msra.mxu0 0.0
    %392 = vmatprep.subr.mxu0 0.0
    %393 = vmatpush1.msra.mxu0 %v290
    %394 = vmatprep.subr.mxu0 0.0
    %395 = vmatpush1.msra.mxu0 %v278
    %396 = vmatprep.subr.mxu0 0.0
    %397 = vmatpush1.msra.mxu0 %v284
    %398 = vmatprep.subr.mxu0 0.0
    %399 = vmatpush2.msra.mxu0 0.0
    %400 = vmatprep.subr.mxu0 0.0
    %401 = vmatpush2.msra.mxu0 0.0
    %402 = vmatprep.subr.mxu0 0.0
    %403 = vmatpush2.msra.mxu0 0.0
    %404 = vmatprep.subr.mxu0 0.0
    %405 = vmatpush2.msra.mxu0 0.0
    %406 = vmatprep.subr.mxu0 0.0
    %407 = vmatpush2.msra.mxu0 0.0
    %408 = vmatprep.subr.mxu0 0.0
    %409 = vmatpush2.msra.mxu0 0.0
    %410 = vmatprep.subr.mxu0 0.0
    %411 = vmatpush2.msra.mxu0 0.0
    %412 = vmatprep.subr.mxu0 0.0
    %413 = vmatpush2.msra.mxu0 0.0
    %414 = vmatprep.subr.mxu0 0.0
    %415 = vmatpush2.msra.mxu0 0.0
    %416 = vmatprep.subr.mxu0 0.0
    %417 = vmatpush2.msra.mxu0 0.0
    %418 = vmatprep.subr.mxu0 0.0
    %419 = vmatpush2.msra.mxu0 0.0
    %420 = vmatprep.subr.mxu0 0.0
    %421 = vmatpush2.msra.mxu0 0.0
    %422 = vmatprep.subr.mxu0 0.0
    %423 = vmatpush2.msra.mxu0 0.0
    %424 = vmatprep.subr.mxu0 0.0
    %425 = vmatpush2.msra.mxu0 0.0
    %426 = vmatprep.subr.mxu0 0.0
    %427 = vmatpush2.msra.mxu0 0.0
    %428 = vmatprep.subr.mxu0 0.0
    %429 = vmatpush2.msra.mxu0 0.0
    %430 = vmatprep.mubr.f32.mxu0 0.0
    %431 = vmatmul.mubr.f32.gmra.mxu0 %v294
    %v432 = vpop.f32.mrf.mxu0
    %v433 = vadd.f32 0.0, %v432
    %v434 = vpop.f32.mrf.mxu0
    %435 = vdwg.mxu0
    %436 = vadd.xlane.f32.xlu0 %v363
    %v437 = vpop.xlane.xlu0 %436
    %438 = vadd.xlane.f32.xlu0 %v433
    %v439 = vpop.xlane.xlu0 %438
    %v440 = vadd.f32 %v437, %v439
    %v441 = vmul.f32 %v363, %v363
    %v442 = vmul.f32 %v433, %v433
    %443 = vadd.xlane.f32.xlu0 %v441
    %v444 = vpop.xlane.xlu0 %443
    %445 = vadd.xlane.f32.xlu0 %v442
    %v446 = vpop.xlane.xlu0 %445
    %v447 = vadd.f32 %v444, %v446
    %v448 = vmul.f32 %v440, %v248
    %v449 = vmul.f32 %v447, %v248
    %v450 = vmul.f32 %v448, %v448
    %v451 = vsub.f32 %v449, %v450
    %v452 = vmax.f32 %v451, 0.0
    %v453 = vadd.f32 %v452, 1e-05
    %v454 = vrsqrt.pop %v453
    %v455 = vmul.f32 %v42, %v454
    %v456 = vmul.f32 %v448, %v455
    %458 = vrot.lane.b32.xlu0 %v456, 1
    %v459 = vpop.permute.xlu0 %458
    %v461 = vsub.f32 %v42, %v459
    %462 = vadd.xlane.f32.xlu0 %v155
    %v463 = vpop.xlane.xlu0 %462
    %464 = vadd.xlane.f32.xlu0 %v233
    %v465 = vpop.xlane.xlu0 %464
    %v466 = vadd.f32 %v463, %v465
    %v467 = vmul.f32 %v155, %v155
    %v468 = vmul.f32 %v233, %v233
    %469 = vadd.xlane.f32.xlu0 %v467
    %v470 = vpop.xlane.xlu0 %469
    %471 = vadd.xlane.f32.xlu0 %v468
    %v472 = vpop.xlane.xlu0 %471
    %v473 = vadd.f32 %v470, %v472
    %v474 = vmul.f32 %v466, %v248
    %v475 = vmul.f32 %v473, %v248
    %v476 = vmul.f32 %v474, %v474
    %v477 = vsub.f32 %v475, %v476
    %v478 = vmax.f32 %v477, 0.0
    %v479 = vadd.f32 %v478, 1e-05
    %v480 = vrsqrt.pop %v479
    %v481 = vmul.f32 %v42, %v480
    %v482 = vmul.f32 %v474, %v481
    %484 = vrot.lane.b32.xlu0 %v482, 1
    %v485 = vpop.permute.xlu0 %484
    %v487 = vsub.f32 %v42, %v485
    %489 = vset.pattern.permute.xlu0 38
    %490 = vperm.xlu0 %489, %v455
    %v491 = vpop.permute.xlu0 %490
    %v493 = vmul.f32 %v363, %v491
    %v494 = vmul.f32 %v433, %v491
    %496 = vset.pattern.permute.xlu0 40
    %497 = vperm.xlu0 %496, %v481
    %v498 = vpop.permute.xlu0 %497
    %v500 = vmul.f32 %v155, %v498
    %v501 = vmul.f32 %v233, %v498
    %v502 = vadd.f32 %v493, %v500
    %v503 = vadd.f32 %v494, %v501
    %505 = vrot.lane.b32.xlu0 %v487, 126
    %v506 = vpop.permute.xlu0 %505
    %v508 = vadd.f32 %v461, %v506
    %510 = vset.pattern.permute.xlu0 39
    %511 = vperm.xlu0 %510, %v508
    %v512 = vpop.permute.xlu0 %511
    %v514 = vadd.f32 %v502, %v512
    %v515 = vadd.f32 %v503, %v512
    %v516 = vmax.f32 %v514, 0.0
    %v517 = vmax.f32 %v515, 0.0
    %518 = vst [vmem:[#allocation7] sm:$0xff] %v516
    %519 = vst [vmem:[#allocation7 + $0x8] sm:$0xff] %v517
    // Predicated region
    $region18: #{tpu_custom_call.1} parent=1 // pred_check
      _
    $region19: #{tpu_custom_call.1} parent=1 // pred_check_branch
      %521 = sbr.rel (0) target = $region21
    $region20: #{tpu_custom_call.1} parent=1 // pred_region
      %s523 = ssub.s32 256, 256
      %524 = vsyncadd [#allocation4], %s523
      %s525 = sshll.u32 [#allocation7], 4
      %s526 = int_to_ptr.vmem [resolvable:$true] %s525
      %531 = dma.vmem_to_hbm [thread:$0]  %s526, 256, %s2, [#allocation4], 128, 128, 8
    $region21: #{tpu_custom_call.1} parent=1 // pred_fallthru
      _
    // Predicated region
    $region22: #{tpu_custom_call.1} parent=1 // pred_check
      _
    $region23: #{tpu_custom_call.1} parent=1 // pred_check_branch
      %533 = sbr.rel (0) target = $region25
    $region24: #{tpu_custom_call.1} parent=1 // pred_region
      %534 = dma.done [#allocation4], 256
    $region25: #{tpu_custom_call.1} parent=1 // pred_fallthru
      _
    %535 = vsyncpa [#allocation3], 1
    %536 = vsyncpa [#allocation6], 1
    %537 = vsyncpa [#allocation4], 1

</llo_original>
